<compile_context>
chip_gen: v5e
topology: v5e:2x2
jax: 0.10.0
libtpu: 0.0.40
codegen_flags: <defaults>
</compile_context>

<pallas_src>
import math
import jax
import jax.numpy as jnp
from jax.experimental import pallas as pl
from jax.experimental.pallas import tpu as pltpu


def _round_up(n, m):
    return ((n + m - 1) // m) * m


def _qnet_kernel(x_ref, w1_ref, b1_ref, w2_ref, b2_ref, out_ref):
    # x: [tB, S] f32 (cast to matmul dtype here, hidden under DMA)
    # w1: [S, Hp], b1: [1, Hp] f32, w2: [Hp, A], b2: [1, A] f32 -> out: [tB, A] f32
    x = x_ref[...].astype(w1_ref.dtype)
    h = jnp.dot(x, w1_ref[...], preferred_element_type=jnp.float32) + b1_ref[...]
    h = jnp.maximum(h, 0.0)                 # bias add + ReLU in f32
    h = h.astype(w2_ref.dtype)              # back to matmul dtype for the MXU
    y = jnp.dot(h, w2_ref[...], preferred_element_type=jnp.float32) + b2_ref[...]
    out_ref[...] = y.astype(out_ref.dtype)


def prepare_qnet_params(w1, b1, w2, b2, compute_dtype=jnp.bfloat16):
    """Pad the hidden dim to a multiple of 128 (lane-dense intermediate) and
    cast the matmul operands to compute_dtype. Call ONCE per weight update and
    reuse the result across forward calls. Padding is zeros, so the logical
    outputs are unchanged. The action dim is NOT padded (narrow output is fine;
    the kernel is DMA-bound)."""
    S, H = w1.shape
    _, A = w2.shape
    Hp = _round_up(H, 128)
    w1p = jnp.zeros((S, Hp), compute_dtype).at[:, :H].set(w1.astype(compute_dtype))
    b1p = jnp.zeros((1, Hp), jnp.float32).at[:, :H].set(b1.astype(jnp.float32))
    w2p = jnp.zeros((Hp, A), compute_dtype).at[:H, :].set(w2.astype(compute_dtype))
    b2p = b2.astype(jnp.float32).reshape(1, A)
    return w1p, b1p, w2p, b2p


def _pick_tile_b(B, desired):
    # Keep >= 2 grid steps so the "parallel" batch axis can be split across
    # v7x's two TensorCores (no effect on v5e/v6e, which have 1 TC).
    half = _round_up(max(B // 2, 8), 128)
    return max(128, min(desired, half))


def q_net_forward(x, params, *, tile_b=1024, small_batch_max=256):
    """x: [B, S] f32; params = prepare_qnet_params(...). Returns [B, A] f32.

    Small batches (act path) run a single no-grid kernel, everything VMEM
    resident. Large batches (replay minibatches) stream the batch axis over a
    1-D grid while weights/biases stay VMEM-resident across the whole grid.
    """
    w1p, b1p, w2p, b2p = params
    B, S = x.shape
    Hp = w1p.shape[1]
    A = w2p.shape[1]

    if B <= small_batch_max:
        # ---- small-batch (act) fast path: no grid, no pipeline bookkeeping ----
        # TODO(synk): for latency-critical act(), keep the padded weights
        # VMEM-resident across calls (cross-call prefetch / persistent weights)
        # instead of re-DMAing ~10 KB of bf16 weights per call.
        return pl.pallas_call(
            _qnet_kernel,
            out_shape=jax.ShapeDtypeStruct((B, A), jnp.float32),
            in_specs=[pl.BlockSpec(memory_space=pltpu.MemorySpace.VMEM)] * 5,
            out_specs=pl.BlockSpec(memory_space=pltpu.MemorySpace.VMEM),
        )(x, w1p, b1p, w2p, b2p)

    # ---- batch-tiled path for replay minibatches ----
    tb = _pick_tile_b(B, tile_b)
    grid = (pl.cdiv(B, tb),)  # ragged B: Pallas masks the partial last out block
    return pl.pallas_call(
        _qnet_kernel,
        out_shape=jax.ShapeDtypeStruct((B, A), jnp.float32),
        grid_spec=pltpu.PrefetchScalarGridSpec(
            num_scalar_prefetch=0,
            grid=grid,
            in_specs=[
                pl.BlockSpec((tb, S), lambda i: (i, 0)),   # x: streamed per tile (f32)
                # Constant index_maps -> blocks fetched once, no per-step re-DMA.
                pl.BlockSpec((S, Hp), lambda i: (0, 0)),   # w1: VMEM-resident
                pl.BlockSpec((1, Hp), lambda i: (0, 0)),   # b1: VMEM-resident
                pl.BlockSpec((Hp, A), lambda i: (0, 0)),   # w2: VMEM-resident
                pl.BlockSpec((1, A),  lambda i: (0, 0)),   # b2: VMEM-resident
            ],
            out_specs=pl.BlockSpec((tb, A), lambda i: (i, 0)),  # narrow, un-padded out
        ),
        compiler_params=pltpu.CompilerParams(
            # independent batch tiles -> megacore split on v7x (2 TC/chip)
            dimension_semantics=("parallel",)),
    )(x, w1p, b1p, w2p, b2p)


def init_qnet_params(key, state_dim, hidden_dim, action_dim):
    """Deterministic init mimicking torch.nn.Linear default (uniform ±1/sqrt(fan_in)).
    Weights are stored transposed relative to PyTorch: [in_features, out_features]."""
    k1, k2, k3, k4 = jax.random.split(key, 4)
    bound1 = 1.0 / math.sqrt(state_dim)
    bound2 = 1.0 / math.sqrt(hidden_dim)
    w1 = jax.random.uniform(k1, (state_dim, hidden_dim), jnp.float32, -bound1, bound1)
    b1 = jax.random.uniform(k2, (hidden_dim,), jnp.float32, -bound1, bound1)
    w2 = jax.random.uniform(k3, (hidden_dim, action_dim), jnp.float32, -bound2, bound2)
    b2 = jax.random.uniform(k4, (action_dim,), jnp.float32, -bound2, bound2)
    return w1, b1, w2, b2


def q_net_reference(x, w1, b1, w2, b2):
    h = jnp.maximum(x @ w1 + b1, 0.0)
    return h @ w2 + b2


def q_net_reference_bf16(x, w1, b1, w2, b2):
    """Reference matching the bf16-operand / f32-accumulate kernel path."""
    xb = x.astype(jnp.bfloat16)
    w1b = w1.astype(jnp.bfloat16)
    w2b = w2.astype(jnp.bfloat16)
    h = jnp.dot(xb, w1b, preferred_element_type=jnp.float32) + b1
    h = jnp.maximum(h, 0.0).astype(jnp.bfloat16)
    return jnp.dot(h, w2b, preferred_element_type=jnp.float32) + b2


if __name__ == "__main__":
    # state_dim = window * n_features (e.g. 8 * 4 = 32), hidden_dim = 32, action_dim = 8
    batch, state_dim, hidden_dim, action_dim = 8, 32, 32, 8

    key = jax.random.PRNGKey(0)
    k_x, k_p, k_xbig = jax.random.split(key, 3)
    x = jax.random.normal(k_x, (batch, state_dim), jnp.float32)
    w1, b1, w2, b2 = init_qnet_params(k_p, state_dim, hidden_dim, action_dim)

    # Prepare padded/cast params ONCE; reuse across calls (hoisted out of forward).
    params_f32 = prepare_qnet_params(w1, b1, w2, b2, compute_dtype=jnp.float32)
    params_bf16 = prepare_qnet_params(w1, b1, w2, b2)  # bf16 default on all TPU gens

    # --- small-batch (act) path, f32 operands: exact check vs reference ---
    y = q_net_forward(x, params_f32)
    jax.block_until_ready(y)
    y_ref = q_net_reference(x, w1, b1, w2, b2)
    assert y.shape == (batch, action_dim)
    assert jnp.allclose(y, y_ref, atol=1e-5, rtol=1e-5), "small-batch f32 mismatch"

    # --- small-batch path, bf16 operands (default): check vs bf16 reference ---
    y_s = q_net_forward(x, params_bf16)
    jax.block_until_ready(y_s)
    y_s_ref = q_net_reference_bf16(x, w1, b1, w2, b2)
    assert jnp.allclose(y_s, y_s_ref, atol=2e-2, rtol=2e-2), "small-batch bf16 mismatch"

    # --- replay-minibatch path: batch-tiled, ragged B (exercises cdiv grid) ---
    big_batch = 1000
    x_big = jax.random.normal(k_xbig, (big_batch, state_dim), jnp.float32)
    y_big = q_net_forward(x_big, params_bf16, tile_b=1024)
    jax.block_until_ready(y_big)
    y_big_ref = q_net_reference_bf16(x_big, w1, b1, w2, b2)
    assert y_big.shape == (big_batch, action_dim)
    assert jnp.allclose(y_big, y_big_ref, atol=2e-2, rtol=2e-2), "big-batch mismatch"

    print("KERNEL_OK")
</pallas_src>

<mosaic_0001>
module attributes {stable_mosaic.version = 11 : i64} {
  func.func @_qnet_kernel(%arg0: memref<8x32xf32, #tpu.memory_space<vmem>>, %arg1: memref<32x128xf32, #tpu.memory_space<vmem>>, %arg2: memref<1x128xf32, #tpu.memory_space<vmem>>, %arg3: memref<128x8xf32, #tpu.memory_space<vmem>>, %arg4: memref<1x8xf32, #tpu.memory_space<vmem>>, %arg5: memref<8x8xf32, #tpu.memory_space<vmem>>) attributes {dimension_semantics = [], scalar_prefetch = 0 : i64, scratch_operands = 0 : i64, tpu.core_type = #tpu.core_type<tc>} {
    %c0 = arith.constant 0 : index
    %c0_0 = arith.constant 0 : index
    %0 = vector.load %arg0[%c0, %c0_0] : memref<8x32xf32, #tpu.memory_space<vmem>>, vector<8x32xf32>
    %c0_1 = arith.constant 0 : index
    %c0_2 = arith.constant 0 : index
    %1 = vector.load %arg1[%c0_1, %c0_2] : memref<32x128xf32, #tpu.memory_space<vmem>>, vector<32x128xf32>
    %cst = arith.constant dense<0.000000e+00> : vector<8x128xf32>
    %2 = tpu.matmul %0, %1, %cst {dimension_numbers = #tpu.dot_dimension_numbers<[1], [0], [0], [1], [0, 0, 1, 1], [], []>} : vector<8x32xf32>, vector<32x128xf32>, vector<8x128xf32> -> vector<8x128xf32>
    %c0_3 = arith.constant 0 : index
    %c0_4 = arith.constant 0 : index
    %3 = vector.load %arg2[%c0_3, %c0_4] : memref<1x128xf32, #tpu.memory_space<vmem>>, vector<1x128xf32>
    %4 = vector.broadcast %3 : vector<1x128xf32> to vector<8x128xf32>
    %5 = arith.addf %2, %4 : vector<8x128xf32>
    %cst_5 = arith.constant 0.000000e+00 : f32
    %6 = vector.broadcast %cst_5 : f32 to vector<8x128xf32>
    %7 = arith.maximumf %5, %6 : vector<8x128xf32>
    %c0_6 = arith.constant 0 : index
    %c0_7 = arith.constant 0 : index
    %8 = vector.load %arg3[%c0_6, %c0_7] : memref<128x8xf32, #tpu.memory_space<vmem>>, vector<128x8xf32>
    %cst_8 = arith.constant dense<0.000000e+00> : vector<8x8xf32>
    %9 = tpu.matmul %7, %8, %cst_8 {dimension_numbers = #tpu.dot_dimension_numbers<[1], [0], [0], [1], [0, 0, 1, 1], [], []>} : vector<8x128xf32>, vector<128x8xf32>, vector<8x8xf32> -> vector<8x8xf32>
    %c0_9 = arith.constant 0 : index
    %c0_10 = arith.constant 0 : index
    %10 = vector.load %arg4[%c0_9, %c0_10] : memref<1x8xf32, #tpu.memory_space<vmem>>, vector<1x8xf32>
    %11 = vector.broadcast %10 : vector<1x8xf32> to vector<8x8xf32>
    %12 = arith.addf %9, %11 : vector<8x8xf32>
    %c0_11 = arith.constant 0 : index
    %c0_12 = arith.constant 0 : index
    %13 = vector.load %arg5[%c0_11, %c0_12] : memref<8x8xf32, #tpu.memory_space<vmem>>, vector<8x8xf32>
    tpu.vector_store %arg5[%c0_11, %c0_12], %12 {strides = array<i32>} : memref<8x8xf32, #tpu.memory_space<vmem>>, vector<8x8xf32>,
    return
  }
}

</mosaic_0001>

<llo_original>
// kernel: tpu_custom_call.1
$region0: #{tpu_custom_call.1}
  #allocation0 [shape = 'u32[]', space=smem, size = 0x4, offset = 0x4, fixed_abs, tag = 'smem constant byte address 0x4 - core index']
  #allocation1 [shape = 'u32[72,128]{1,0:T(1,128)}', space=vmem, size = 0x9000, scoped, tag = 'internal scratch']
  %s0 = inlined_call_operand.vmem [shape: f32[8,32], index: 0, kind: input, shape index: {}]
  %s1 = inlined_call_operand.vmem [shape: f32[32,128], index: 1, kind: input, shape index: {}]
  %s2 = inlined_call_operand.vmem [shape: f32[1,128], index: 2, kind: input, shape index: {}]
  %s3 = inlined_call_operand.vmem [shape: f32[128,8], index: 3, kind: input, shape index: {}]
  %s4 = inlined_call_operand.vmem [shape: f32[1,8], index: 4, kind: input, shape index: {}]
  %s5 = inlined_call_operand.hbm [shape: f32[8,8], index: 5, kind: output, shape index: {}]
  %s6 = sld [smem:[#allocation0]]
  $region30: #{tpu_custom_call.1} parent=0
    _
  %s8 = ssub.s32 1, %s6
  %s9 = scalar_select 0, %s8, %s6
  $region1: #{tpu_custom_call.1} parent=0
    #allocation2 [shape = 'u8[4096]{0}', space=vmem, size = 0x1000, scoped, tag = 'output window, operand 0, single buffered']
    #allocation3 [shape = 's32[1]{0}', space=sflag, size = 0x4, scoped, tag = 'scoped memory for tpu_custom_call.1']
    %10 = vsyncpa [#allocation3], 0
    // Predicated region
    $region2: #{tpu_custom_call.1} parent=1 // pred_check
      _
    $region3: #{tpu_custom_call.1} parent=1 // pred_check_branch
      %12 = sbr.rel (0) target = $region5
    $region4: #{tpu_custom_call.1} parent=1 // pred_region
      _
    $region5: #{tpu_custom_call.1} parent=1 // pred_fallthru
      _
    // Predicated region
    $region6: #{tpu_custom_call.1} parent=1 // pred_check
      _
    $region7: #{tpu_custom_call.1} parent=1 // pred_check_branch
      %14 = sbr.rel (0) target = $region9
    $region8: #{tpu_custom_call.1} parent=1 // pred_region
      _
    $region9: #{tpu_custom_call.1} parent=1 // pred_fallthru
      _
    // Predicated region
    $region10: #{tpu_custom_call.1} parent=1 // pred_check
      _
    $region11: #{tpu_custom_call.1} parent=1 // pred_check_branch
      %16 = sbr.rel (0) target = $region13
    $region12: #{tpu_custom_call.1} parent=1 // pred_region
      _
    $region13: #{tpu_custom_call.1} parent=1 // pred_fallthru
      _
    // Predicated region
    $region14: #{tpu_custom_call.1} parent=1 // pred_check
      _
    $region15: #{tpu_custom_call.1} parent=1 // pred_check_branch
      %18 = sbr.rel (0) target = $region17
    $region16: #{tpu_custom_call.1} parent=1 // pred_region
      _
    $region17: #{tpu_custom_call.1} parent=1 // pred_fallthru
      _
    // Predicated region
    $region18: #{tpu_custom_call.1} parent=1 // pred_check
      _
    $region19: #{tpu_custom_call.1} parent=1 // pred_check_branch
      %20 = sbr.rel (0) target = $region21
    $region20: #{tpu_custom_call.1} parent=1 // pred_region
      _
    $region21: #{tpu_custom_call.1} parent=1 // pred_fallthru
      _
    %v21 = vld [vmem:[%s0] sm:$0xff]
    %v22 = vld [vmem:[%s1] sm:$0xff]
    %v23 = vld [vmem:[%s1 + $0x8] sm:$0xff]
    %v24 = vld [vmem:[%s1 + $0x10] sm:$0xff]
    %v25 = vld [vmem:[%s1 + $0x18] sm:$0xff]
    %v26 = vld [vmem:[%s2] sm:$0x1]
    %v28 = vperm.slane %v26, 0
    %vm30 = vcmask 261120
    %v32 = vsel %vm30, %v21, 0
    %34 = vmatpush.msra.mxu0 0.0
    %35 = vmatpush.msra.mxu0 0.0
    %36 = vmatpush.msra.mxu0 0.0
    %37 = vmatpush.msra.mxu0 0.0
    %38 = vmatpush.msra.mxu0 0.0
    %39 = vmatpush.msra.mxu0 0.0
    %40 = vmatpush.msra.mxu0 0.0
    %41 = vmatpush.msra.mxu0 0.0
    %42 = vmatpush.msra.mxu0 0.0
    %43 = vmatpush.msra.mxu0 0.0
    %44 = vmatpush.msra.mxu0 0.0
    %45 = vmatpush.msra.mxu0 0.0
    %46 = vmatpush.msra.mxu0 %v25
    %47 = vmatpush.msra.mxu0 %v24
    %48 = vmatpush.msra.mxu0 %v23
    %49 = vmatpush.msra.mxu0 %v22
    %50 = vmatmul.f32.gmra.mxu0 %v32
    %v51 = vpop.f32.mrf.mxu0
    %v52 = vadd.f32 %v28, %v51
    %53 = vdwg.mxu0
    %v54 = vmax.f32 %v52, 0.0
    %v55 = vld [vmem:[%s3] sm:$0xff]
    %v56 = vld [vmem:[%s3 + $0x8] sm:$0xff]
    %v57 = vld [vmem:[%s3 + $0x10] sm:$0xff]
    %v58 = vld [vmem:[%s3 + $0x18] sm:$0xff]
    %v59 = vld [vmem:[%s3 + $0x20] sm:$0xff]
    %v60 = vld [vmem:[%s3 + $0x28] sm:$0xff]
    %v61 = vld [vmem:[%s3 + $0x30] sm:$0xff]
    %v62 = vld [vmem:[%s3 + $0x38] sm:$0xff]
    %v63 = vld [vmem:[%s3 + $0x40] sm:$0xff]
    %v64 = vld [vmem:[%s3 + $0x48] sm:$0xff]
    %v65 = vld [vmem:[%s3 + $0x50] sm:$0xff]
    %v66 = vld [vmem:[%s3 + $0x58] sm:$0xff]
    %v67 = vld [vmem:[%s3 + $0x60] sm:$0xff]
    %v68 = vld [vmem:[%s3 + $0x68] sm:$0xff]
    %v69 = vld [vmem:[%s3 + $0x70] sm:$0xff]
    %v70 = vld [vmem:[%s3 + $0x78] sm:$0xff]
    %v71 = vld [vmem:[%s4] sm:$0x1]
    %v73 = vperm.slane %v71, 0
    %75 = vmatpush.msra.mxu0 %v70
    %76 = vmatpush.msra.mxu0 %v69
    %77 = vmatpush.msra.mxu0 %v68
    %78 = vmatpush.msra.mxu0 %v67
    %79 = vmatpush.msra.mxu0 %v66
    %80 = vmatpush.msra.mxu0 %v65
    %81 = vmatpush.msra.mxu0 %v64
    %82 = vmatpush.msra.mxu0 %v63
    %83 = vmatpush.msra.mxu0 %v62
    %84 = vmatpush.msra.mxu0 %v61
    %85 = vmatpush.msra.mxu0 %v60
    %86 = vmatpush.msra.mxu0 %v59
    %87 = vmatpush.msra.mxu0 %v58
    %88 = vmatpush.msra.mxu0 %v57
    %89 = vmatpush.msra.mxu0 %v56
    %90 = vmatpush.msra.mxu0 %v55
    %91 = vmatmul.f32.gmra.mxu0 %v54
    %v92 = vpop.f32.mrf.mxu0
    %v93 = vadd.f32 %v73, %v92
    %94 = vdwg.mxu0
    %vm95 = vcmask 64512
    %96 = vst.msk [vmem:[#allocation2] sm:$0xff] %vm95, %v93
    // Predicated region
    $region22: #{tpu_custom_call.1} parent=1 // pred_check
      _
    $region23: #{tpu_custom_call.1} parent=1 // pred_check_branch
      %98 = sbr.rel (0) target = $region25
    $region24: #{tpu_custom_call.1} parent=1 // pred_region
      %100 = vsyncadd [#allocation3], 0
      %s102 = sshll.u32 [#allocation2], 4
      %s103 = int_to_ptr.vmem [resolvable:$true] %s102
      %s104 = sshll.u32 %s5, 4
      %s105 = int_to_ptr.hbm [resolvable:$true] %s104
      %107 = dma.vmem_to_hbm [thread:$0]  %s103, 128, %s105, [#allocation3]
    $region25: #{tpu_custom_call.1} parent=1 // pred_fallthru
      _
    // Predicated region
    $region26: #{tpu_custom_call.1} parent=1 // pred_check
      _
    $region27: #{tpu_custom_call.1} parent=1 // pred_check_branch
      %109 = sbr.rel (0) target = $region29
    $region28: #{tpu_custom_call.1} parent=1 // pred_region
      %111 = dma.done [#allocation3], 128
    $region29: #{tpu_custom_call.1} parent=1 // pred_fallthru
      _
    %112 = vsyncpa [#allocation3], 1

</llo_original>
